<compile_context>
chip_gen: v7x
topology: tpu7x:2x2x1
jax: 0.10.0
libtpu: 0.0.40
codegen_flags: <defaults>
</compile_context>

<pallas_src>
import functools

import jax
import jax.numpy as jnp
from jax import lax
from jax.experimental import pallas as pl
from jax.experimental.pallas import tpu as pltpu


def _homo_loss_kernel(thrd_ref, xs_ref, xd_ref, w_ref, inv_ref, out_ref):
    # xs_ref / xd_ref : (D, TE) feature tiles, native dtype (edges on lanes)
    # w_ref           : (1, TE) raw edge weights, f32
    # inv_ref         : (1, TE) precomputed 1/(||x_s|| * ||x_d||), f32
    # out_ref         : (1, 2, 128) partials: row 0 = masked sum, row 1 = count
    d, te = xs_ref.shape

    # Dot product accumulated over D in sublane chunks so we never hold a full
    # (D, TE) f32 temporary in VMEM / vregs.
    ck = min(64, d)
    acc = jnp.zeros((1, te), jnp.float32)
    c0 = 0
    while c0 < d:                                   # static (trace-time) loop
        c1 = min(d, c0 + ck)
        a = xs_ref[c0:c1, :].astype(jnp.float32)
        b = xd_ref[c0:c1, :].astype(jnp.float32)
        acc = acc + jnp.sum(a * b, axis=0, keepdims=True)
        c0 = c1

    cos = acc * inv_ref[...]                        # (1, TE)

    thrd = thrd_ref[0]                              # SMEM scalar (prefetched)
    mask = (w_ref[...] > 0.0).astype(jnp.float32)   # (1, TE)
    val = jnp.maximum(thrd - cos, 0.0) * mask       # (1, TE)

    # Fold lane groups of 128 with cheap VPU adds; keep the stored partials
    # lane-dense and leave the final cross-lane reduce to JAX (amortized once).
    n_grp = te // 128
    pv = val[:, 0:128]
    pm = mask[:, 0:128]
    for g in range(1, n_grp):
        pv = pv + val[:, g * 128:(g + 1) * 128]
        pm = pm + mask[:, g * 128:(g + 1) * 128]

    out_ref[:, 0:1, :] = pv.reshape(1, 1, 128)
    out_ref[:, 1:2, :] = pm.reshape(1, 1, 128)


def _round_up(v, m):
    return ((v + m - 1) // m) * m


def _pick_tile_e(e, d, itemsize):
    """Edge-tile size targeting ~12 MiB of per-step VMEM (v7x-safe)."""
    vmem_target = 12 * 1024 * 1024
    ck = min(64, max(1, d))
    # 2 inputs x 2 pipeline buffers x d x itemsize  (xs, xd)
    # + 2 x 2 x 4 bytes                            (w, inv f32 vectors)
    # + 3 x ck x 4 bytes                           (per-chunk f32 temporaries)
    per_edge = 4 * d * itemsize + 16 + 12 * ck + 64
    te = max(128, (vmem_target // per_edge) // 128 * 128)
    te = min(te, 8192)                              # amortizes grid overhead
    te = min(te, max(128, _round_up(e, 128)))       # don't over-pad tiny E
    return int(te)


@functools.partial(jax.jit, static_argnames=("tile_e",))
def homo_loss(trigger_edge_index, trigger_edge_weights, x, thrd, tile_e=None):
    """Pallas implementation of HomoLoss.forward. Returns scalar f32 loss."""
    src = trigger_edge_index[0]
    dst = trigger_edge_index[1]
    e = int(trigger_edge_weights.shape[0])
    n, d = x.shape

    if tile_e is None:
        tile_e = _pick_tile_e(e, d, jnp.dtype(x.dtype).itemsize)
    assert tile_e % 128 == 0, "tile_e must be a multiple of 128"

    num_tiles = max(1, -(-e // tile_e))
    e_pad = num_tiles * tile_e
    pad = e_pad - e

    # Pad the small O(E) vectors before the gather (index 0 is a valid node,
    # weight 0 keeps padded edges masked out).  The (D, E) matrices are never
    # padded separately.
    src_p = jnp.pad(src, (0, pad)) if pad else src
    dst_p = jnp.pad(dst, (0, pad)) if pad else dst
    w_p = jnp.pad(trigger_edge_weights, (0, pad)) if pad else trigger_edge_weights

    # Per-node inverse norms, computed once in f32 (NOT folded into bf16 x,
    # to preserve accuracy): max(sqrt(s), 1e-8) == sqrt(max(s, 1e-16)).
    xf = x.astype(jnp.float32)
    inv_norm = lax.rsqrt(jnp.maximum(jnp.sum(xf * xf, axis=1), jnp.float32(1e-16)))

    # Glue (XLA): gather endpoint features into the lane-dense (D, E) layout.
    # x keeps its native dtype (bf16 inputs stream at half the HBM bytes).
    xs_t = jnp.take(x, src_p, axis=0).T                        # (D, E_pad)
    xd_t = jnp.take(x, dst_p, axis=0).T                        # (D, E_pad)
    inv_prod = (jnp.take(inv_norm, src_p) *
                jnp.take(inv_norm, dst_p)).reshape(1, e_pad)   # (1, E_pad) f32
    w2 = w_p.astype(jnp.float32).reshape(1, e_pad)             # (1, E_pad) f32

    thrd_arr = jnp.asarray(thrd, jnp.float32).reshape((1,))

    partials = pl.pallas_call(
        _homo_loss_kernel,
        out_shape=jax.ShapeDtypeStruct((num_tiles, 2, 128), jnp.float32),
        grid_spec=pltpu.PrefetchScalarGridSpec(
            num_scalar_prefetch=1,                             # thrd -> SMEM
            grid=(num_tiles,),
            in_specs=[
                pl.BlockSpec((d, tile_e), lambda i, thrd: (0, i)),
                pl.BlockSpec((d, tile_e), lambda i, thrd: (0, i)),
                pl.BlockSpec((1, tile_e), lambda i, thrd: (0, i)),
                pl.BlockSpec((1, tile_e), lambda i, thrd: (0, i)),
            ],
            out_specs=pl.BlockSpec((1, 2, 128), lambda i, thrd: (i, 0, 0)),
        ),
        compiler_params=pltpu.CompilerParams(
            # Edge tiles are independent -> shardable across TensorCores.
            dimension_semantics=("parallel",),
            # Raise above the 16 MiB v5e default; per-step usage stays ~12 MiB.
            vmem_limit_bytes=64 * 1024 * 1024,
        ),
    )(thrd_arr, xs_t, xd_t, w2, inv_prod)

    total = jnp.sum(partials[:, 0, :])
    count = jnp.sum(partials[:, 1, :])
    # Guard against zero selected edges (PyTorch would give NaN; we return 0).
    return total / jnp.maximum(count, 1.0)


def homo_loss_ref(trigger_edge_index, trigger_edge_weights, x, thrd):
    """Pure-JAX reference mirroring the PyTorch forward (for validation)."""
    keep = trigger_edge_weights > 0.0
    src = trigger_edge_index[0]
    dst = trigger_edge_index[1]
    a = x[src].astype(jnp.float32)
    b = x[dst].astype(jnp.float32)
    eps = 1e-8
    dot = jnp.sum(a * b, axis=-1)
    na = jnp.maximum(jnp.linalg.norm(a, axis=-1), eps)
    nb = jnp.maximum(jnp.linalg.norm(b, axis=-1), eps)
    sims = dot / (na * nb)
    vals = jnp.maximum(thrd - sims, 0.0) * keep.astype(jnp.float32)
    return jnp.sum(vals) / jnp.maximum(jnp.sum(keep.astype(jnp.float32)), 1.0)


if __name__ == "__main__":
    key = jax.random.PRNGKey(0)
    k1, k2, k3 = jax.random.split(key, 3)

    num_nodes, feat_dim, num_edges = 16, 32, 24
    thrd = 0.5

    x = jax.random.normal(k1, (num_nodes, feat_dim), dtype=jnp.float32)
    trigger_edge_index = jax.random.randint(
        k2, (2, num_edges), 0, num_nodes, dtype=jnp.int32)
    # Mix of positive and non-positive weights so the filter is exercised.
    trigger_edge_weights = jax.random.uniform(
        k3, (num_edges,), minval=-0.5, maxval=1.0, dtype=jnp.float32)

    loss = homo_loss(trigger_edge_index, trigger_edge_weights, x, thrd)
    loss = jax.block_until_ready(loss)

    ref = homo_loss_ref(trigger_edge_index, trigger_edge_weights, x, thrd)
    assert jnp.allclose(loss, ref, atol=1e-5, rtol=1e-4), (loss, ref)

    print("KERNEL_OK")
</pallas_src>

<mosaic_0001>
module attributes {stable_mosaic.version = 11 : i64} {
  func.func @_homo_loss_kernel(%arg0: i32, %arg1: memref<1xf32, #tpu.memory_space<smem>>, %arg2: memref<32x128xf32, #tpu.memory_space<vmem>>, %arg3: memref<32x128xf32, #tpu.memory_space<vmem>>, %arg4: memref<1x128xf32, #tpu.memory_space<vmem>>, %arg5: memref<1x128xf32, #tpu.memory_space<vmem>>, %arg6: memref<1x2x128xf32, #tpu.memory_space<vmem>>) attributes {dimension_semantics = [#tpu.dimension_semantics<parallel>], iteration_bounds = array<i64: 1>, scalar_prefetch = 1 : i64, scratch_operands = 0 : i64, tpu.core_type = #tpu.core_type<tc>, window_params = [{transform_indices = @transform_0, window_bounds = array<i64: 32, 128>}, {transform_indices = @transform_1, window_bounds = array<i64: 32, 128>}, {transform_indices = @transform_2, window_bounds = array<i64: 1, 128>}, {transform_indices = @transform_3, window_bounds = array<i64: 1, 128>}, {transform_indices = @transform_4, window_bounds = array<i64: 1, 2, 128>}]} {
    %cst = arith.constant 0.000000e+00 : f32
    %0 = vector.broadcast %cst : f32 to vector<1x128xf32>
    %c0 = arith.constant 0 : index
    %c0_0 = arith.constant 0 : index
    %1 = vector.load %arg2[%c0, %c0_0] : memref<32x128xf32, #tpu.memory_space<vmem>>, vector<32x128xf32>
    %c0_1 = arith.constant 0 : index
    %c0_2 = arith.constant 0 : index
    %2 = vector.load %arg3[%c0_1, %c0_2] : memref<32x128xf32, #tpu.memory_space<vmem>>, vector<32x128xf32>
    %3 = arith.mulf %1, %2 : vector<32x128xf32>
    %cst_3 = arith.constant dense<0.000000e+00> : vector<128xf32>
    %4 = vector.multi_reduction <add>, %3, %cst_3 [0] : vector<32x128xf32> to vector<128xf32>
    %5 = vector.shape_cast %4 : vector<128xf32> to vector<1x128xf32>
    %6 = arith.addf %0, %5 : vector<1x128xf32>
    %c0_4 = arith.constant 0 : index
    %c0_5 = arith.constant 0 : index
    %7 = vector.load %arg5[%c0_4, %c0_5] : memref<1x128xf32, #tpu.memory_space<vmem>>, vector<1x128xf32>
    %8 = arith.mulf %6, %7 : vector<1x128xf32>
    %c0_6 = arith.constant 0 : index
    %9 = memref.load %arg1[%c0_6] : memref<1xf32, #tpu.memory_space<smem>>
    %c0_7 = arith.constant 0 : index
    %c0_8 = arith.constant 0 : index
    %10 = vector.load %arg4[%c0_7, %c0_8] : memref<1x128xf32, #tpu.memory_space<vmem>>, vector<1x128xf32>
    %cst_9 = arith.constant 0.000000e+00 : f32
    %11 = vector.broadcast %cst_9 : f32 to vector<1x128xf32>
    %12 = arith.cmpf ogt, %10, %11 : vector<1x128xf32>
    %13 = arith.extui %12 : vector<1x128xi1> to vector<1x128xi32>
    %14 = arith.sitofp %13 : vector<1x128xi32> to vector<1x128xf32>
    %15 = vector.broadcast %9 : f32 to vector<1x128xf32>
    %16 = arith.subf %15, %8 : vector<1x128xf32>
    %cst_10 = arith.constant 0.000000e+00 : f32
    %17 = vector.broadcast %cst_10 : f32 to vector<1x128xf32>
    %18 = arith.maximumf %16, %17 : vector<1x128xf32>
    %19 = arith.mulf %18, %14 : vector<1x128xf32>
    %20 = vector.shape_cast %19 : vector<1x128xf32> to vector<1x1x128xf32>
    %c0_11 = arith.constant 0 : index
    %c0_12 = arith.constant 0 : index
    %c0_13 = arith.constant 0 : index
    %21 = vector.load %arg6[%c0_11, %c0_12, %c0_13] : memref<1x2x128xf32, #tpu.memory_space<vmem>>, vector<1x1x128xf32>
    tpu.vector_store %arg6[%c0_11, %c0_12, %c0_13], %20 {strides = array<i32>} : memref<1x2x128xf32, #tpu.memory_space<vmem>>, vector<1x1x128xf32>,
    %22 = vector.shape_cast %14 : vector<1x128xf32> to vector<1x1x128xf32>
    %c0_14 = arith.constant 0 : index
    %c1 = arith.constant 1 : index
    %c0_15 = arith.constant 0 : index
    %23 = vector.load %arg6[%c0_14, %c1, %c0_15] : memref<1x2x128xf32, #tpu.memory_space<vmem>>, vector<1x1x128xf32>
    tpu.vector_store %arg6[%c0_14, %c1, %c0_15], %22 {strides = array<i32>} : memref<1x2x128xf32, #tpu.memory_space<vmem>>, vector<1x1x128xf32>,
    return
  }
  func.func @transform_0(%arg0: i32, %arg1: memref<1xf32, #tpu.memory_space<smem>>) -> (i32, i32) {
    %c0_i32 = arith.constant 0 : i32
    %c0_i32_0 = arith.constant 0 : i32
    return %c0_i32, %arg0 : i32, i32
  }
  func.func @transform_1(%arg0: i32, %arg1: memref<1xf32, #tpu.memory_space<smem>>) -> (i32, i32) {
    %c0_i32 = arith.constant 0 : i32
    %c0_i32_0 = arith.constant 0 : i32
    return %c0_i32, %arg0 : i32, i32
  }
  func.func @transform_2(%arg0: i32, %arg1: memref<1xf32, #tpu.memory_space<smem>>) -> (i32, i32) {
    %c0_i32 = arith.constant 0 : i32
    %c0_i32_0 = arith.constant 0 : i32
    return %c0_i32, %arg0 : i32, i32
  }
  func.func @transform_3(%arg0: i32, %arg1: memref<1xf32, #tpu.memory_space<smem>>) -> (i32, i32) {
    %c0_i32 = arith.constant 0 : i32
    %c0_i32_0 = arith.constant 0 : i32
    return %c0_i32, %arg0 : i32, i32
  }
  func.func @transform_4(%arg0: i32, %arg1: memref<1xf32, #tpu.memory_space<smem>>) -> (i32, i32, i32) {
    %c0_i32 = arith.constant 0 : i32
    %c0_i32_0 = arith.constant 0 : i32
    %c0_i32_1 = arith.constant 0 : i32
    return %arg0, %c0_i32, %c0_i32_0 : i32, i32, i32
  }
}

</mosaic_0001>

<llo_original>
// kernel: homo_loss.1
$region0: #{homo_loss.1}
  #allocation0 [shape = 'u32[]', space=smem, size = 0x4, offset = 0x4, fixed_abs, tag = 'smem constant byte address 0x4 - core index']
  #allocation1 [shape = 'u32[144,128]{1,0:T(1,128)}', space=vmem, size = 0x12000, scoped, tag = 'internal scratch']
  #allocation2 [shape = 's32[1]{0}', space=sflag, size = 0x4, scoped, tag = 'scoped memory for homo_loss.1']
  #allocation3 [shape = 'f32[1]{0:T(128)S(6)}', space=smem, size = 0x200, scoped, tag = 'prefetched SMEM operand 0']
  %s0 = inlined_call_operand.<no memory space> [shape: f32[1], index: 0, kind: input, shape index: {}]
  %s1 = inlined_call_operand.hbm [shape: f32[32,128], index: 1, kind: input, shape index: {}]
  %s2 = inlined_call_operand.hbm [shape: f32[32,128], index: 2, kind: input, shape index: {}]
  %s3 = inlined_call_operand.hbm [shape: f32[1,128], index: 3, kind: input, shape index: {}]
  %s4 = inlined_call_operand.hbm [shape: f32[1,128], index: 4, kind: input, shape index: {}]
  %s5 = inlined_call_operand.hbm [shape: f32[1,2,128], index: 5, kind: output, shape index: {}]
  %s6 = sld [smem:[#allocation0]]
  $region42: #{homo_loss.1} parent=0
    _
  %s8 = ssub.s32 1, %s6
  %s9 = scalar_select 0, %s8, %s6
  %10 = sst [smem:[#allocation3]] %s0
  $region1: #{homo_loss.1} parent=0
    #allocation4 [shape = 'u8[16384]{0}', space=vmem, size = 0x4000, scoped, tag = 'input window, operand 1, single buffered']
    #allocation5 [shape = 's32[1]{0}', space=sflag, size = 0x4, scoped, tag = 'scoped memory for homo_loss.1']
    #allocation6 [shape = 's32[1]{0}', space=sflag, size = 0x4, scoped, tag = 'scoped memory for homo_loss.1']
    #allocation7 [shape = 'u8[16384]{0}', space=vmem, size = 0x4000, scoped, tag = 'input window, operand 2, single buffered']
    #allocation8 [shape = 's32[1]{0}', space=sflag, size = 0x4, scoped, tag = 'scoped memory for homo_loss.1']
    #allocation9 [shape = 'u8[512]{0}', space=vmem, size = 0x400, scoped, tag = 'input window, operand 3, single buffered']
    #allocation10 [shape = 'u8[512]{0}', space=vmem, size = 0x400, scoped, tag = 'input window, operand 4, single buffered']
    #allocation11 [shape = 's32[1]{0}', space=sflag, size = 0x4, scoped, tag = 'scoped memory for homo_loss.1']
    #allocation12 [shape = 'u8[1024]{0}', space=vmem, size = 0x400, scoped, tag = 'output window, operand 0, single buffered']
    %11 = vsyncpa [#allocation5], 0
    %12 = vsyncpa [#allocation8], 0
    %13 = vsyncpa [#allocation11], 0
    %14 = vsyncpa [#allocation6], 0
    // Predicated region
    $region2: #{homo_loss.1} parent=1 // pred_check
      _
    $region3: #{homo_loss.1} parent=1 // pred_check_branch
      %16 = sbr.rel (0) target = $region5
    $region4: #{homo_loss.1} parent=1 // pred_region
      %s18 = ssub.s32 512, 512
      %19 = vsyncadd [#allocation5], %s18
      %s20 = sshll.u32 [#allocation4], 4
      %s21 = int_to_ptr.vmem [resolvable:$true] %s20
      %26 = dma.hbm_to_vmem [thread:$0]  %s1, 512, %s21, [#allocation5], 128, 128, 8
    $region5: #{homo_loss.1} parent=1 // pred_fallthru
      _
    // Predicated region
    $region6: #{homo_loss.1} parent=1 // pred_check
      _
    $region7: #{homo_loss.1} parent=1 // pred_check_branch
      %28 = sbr.rel (0) target = $region9
    $region8: #{homo_loss.1} parent=1 // pred_region
      %s30 = ssub.s32 512, 512
      %31 = vsyncadd [#allocation8], %s30
      %s32 = sshll.u32 [#allocation7], 4
      %s33 = int_to_ptr.vmem [resolvable:$true] %s32
      %38 = dma.hbm_to_vmem [thread:$0]  %s2, 512, %s33, [#allocation8], 128, 128, 8
    $region9: #{homo_loss.1} parent=1 // pred_fallthru
      _
    // Predicated region
    $region10: #{homo_loss.1} parent=1 // pred_check
      _
    $region11: #{homo_loss.1} parent=1 // pred_check_branch
      %40 = sbr.rel (0) target = $region13
    $region12: #{homo_loss.1} parent=1 // pred_region
      %s42 = ssub.s32 16, 16
      %43 = vsyncadd [#allocation8], %s42
      %s45 = sshll.u32 [#allocation9], 4
      %s46 = int_to_ptr.vmem [resolvable:$true] %s45
      %48 = dma.hbm_to_vmem [thread:$0]  %s3, 16, %s46, [#allocation8]
    $region13: #{homo_loss.1} parent=1 // pred_fallthru
      _
    // Predicated region
    $region14: #{homo_loss.1} parent=1 // pred_check
      _
    $region15: #{homo_loss.1} parent=1 // pred_check_branch
      %50 = sbr.rel (0) target = $region17
    $region16: #{homo_loss.1} parent=1 // pred_region
      %s52 = ssub.s32 16, 16
      %53 = vsyncadd [#allocation11], %s52
      %s55 = sshll.u32 [#allocation10], 4
      %s56 = int_to_ptr.vmem [resolvable:$true] %s55
      %58 = dma.hbm_to_vmem [thread:$0]  %s4, 16, %s56, [#allocation11]
    $region17: #{homo_loss.1} parent=1 // pred_fallthru
      _
    // Predicated region
    $region18: #{homo_loss.1} parent=1 // pred_check
      _
    $region19: #{homo_loss.1} parent=1 // pred_check_branch
      %60 = sbr.rel (0) target = $region21
    $region20: #{homo_loss.1} parent=1 // pred_region
      %61 = dma.done [#allocation5], 512
    $region21: #{homo_loss.1} parent=1 // pred_fallthru
      _
    // Predicated region
    $region22: #{homo_loss.1} parent=1 // pred_check
      _
    $region23: #{homo_loss.1} parent=1 // pred_check_branch
      %63 = sbr.rel (0) target = $region25
    $region24: #{homo_loss.1} parent=1 // pred_region
      %64 = dma.done [#allocation8], 512
    $region25: #{homo_loss.1} parent=1 // pred_fallthru
      _
    // Predicated region
    $region26: #{homo_loss.1} parent=1 // pred_check
      _
    $region27: #{homo_loss.1} parent=1 // pred_check_branch
      %66 = sbr.rel (0) target = $region29
    $region28: #{homo_loss.1} parent=1 // pred_region
      %67 = dma.done [#allocation8], 16
    $region29: #{homo_loss.1} parent=1 // pred_fallthru
      _
    // Predicated region
    $region30: #{homo_loss.1} parent=1 // pred_check
      _
    $region31: #{homo_loss.1} parent=1 // pred_check_branch
      %69 = sbr.rel (0) target = $region33
    $region32: #{homo_loss.1} parent=1 // pred_region
      %70 = dma.done [#allocation11], 16
    $region33: #{homo_loss.1} parent=1 // pred_fallthru
      _
    %v71 = vld [vmem:[#allocation4] sm:$0xff]
    %v72 = vld [vmem:[#allocation4 + $0x8] sm:$0xff]
    %v73 = vld [vmem:[#allocation4 + $0x10] sm:$0xff]
    %v74 = vld [vmem:[#allocation4 + $0x18] sm:$0xff]
    %v75 = vld [vmem:[#allocation7] sm:$0xff]
    %v76 = vld [vmem:[#allocation7 + $0x8] sm:$0xff]
    %v77 = vld [vmem:[#allocation7 + $0x10] sm:$0xff]
    %v78 = vld [vmem:[#allocation7 + $0x18] sm:$0xff]
    %v79 = vmul.f32 %v71, %v75
    %v80 = vmul.f32 %v72, %v76
    %v81 = vmul.f32 %v73, %v77
    %v82 = vmul.f32 %v74, %v78
    %v83 = vadd.f32 %v79, %v80
    %v84 = vadd.f32 %v83, %v81
    %v85 = vadd.f32 %v84, %v82
    %v86 = vrot.slane %v85, 4
    %v87 = vadd.f32 %v85, %v86
    %v88 = vrot.slane %v87, 2
    %v89 = vadd.f32 %v87, %v88
    %v90 = vrot.slane %v89, 1
    %v91 = vadd.f32 %v89, %v90
    %v92 = vadd.f32 %v91, 0.0
    %v93 = vld [vmem:[#allocation10] sm:$0x1]
    %v94 = vmul.f32 %v92, %v93
    %s95 = sld [smem:[#allocation3]]
    %v96 = vld [vmem:[#allocation9] sm:$0x1]
    %vm97 = vcmp.gt.f32.partialorder %v96, 0.0
    %v98 = vsel %vm97, 1, 0
    %v99 = vcvt.s32.f32 %v98
    %v100 = vstv %s95
    %v101 = vsub.f32 %v100, %v94
    %v102 = vmax.f32 %v101, 0.0
    %v103 = vmul.f32 %v102, %v99
    %104 = vst [vmem:[#allocation12] sm:$0x1] %v103
    %105 = vst [vmem:[#allocation12 + $0x1] sm:$0x1] %v99
    // Predicated region
    $region34: #{homo_loss.1} parent=1 // pred_check
      _
    $region35: #{homo_loss.1} parent=1 // pred_check_branch
      %107 = sbr.rel (0) target = $region37
    $region36: #{homo_loss.1} parent=1 // pred_region
      %s109 = ssub.s32 32, 32
      %110 = vsyncadd [#allocation6], %s109
      %s112 = sshll.u32 [#allocation12], 4
      %s113 = int_to_ptr.vmem [resolvable:$true] %s112
      %115 = dma.vmem_to_hbm [thread:$0]  %s113, 32, %s5, [#allocation6]
    $region37: #{homo_loss.1} parent=1 // pred_fallthru
      _
    // Predicated region
    $region38: #{homo_loss.1} parent=1 // pred_check
      _
    $region39: #{homo_loss.1} parent=1 // pred_check_branch
      %117 = sbr.rel (0) target = $region41
    $region40: #{homo_loss.1} parent=1 // pred_region
      %118 = dma.done [#allocation6], 32
    $region41: #{homo_loss.1} parent=1 // pred_fallthru
      _
    %119 = vsyncpa [#allocation5], 1
    %120 = vsyncpa [#allocation8], 1
    %121 = vsyncpa [#allocation11], 1
    %122 = vsyncpa [#allocation6], 1

</llo_original>
